<compile_context>
chip_gen: v7x
topology: tpu7x:2x2x1
jax: 0.10.0
libtpu: 0.0.40
codegen_flags: <defaults>
</compile_context>

<pallas_src>
import functools

import jax
import jax.numpy as jnp
from jax.experimental import pallas as pl


# ----------------------------------------------------------------------------
# Fused 2-layer GraphSAGE kernel: agg1 -> lin1(+bias) -> relu -> agg2 ->
# lin2(+bias) -> nan_to_num, everything resident in VMEM.
# ----------------------------------------------------------------------------
def graphsage_fused_kernel(adj_ref, x_ref, wl1_ref, wr1_ref, b1_ref,
                           wl2_ref, wr2_ref, b2_ref, out_ref):
    adj = adj_ref[...]                       # [N, N]   row-normalized adjacency (bf16)
    x = x_ref[...]                           # [N, F_in] f32

    # ---------------- layer 1: SAGEConv(in -> hidden) + ReLU ------------------
    # Neighbor mean: agg1[i] = mean_{j in N(i)} x[j]   (bf16 MXU operands, f32 acc)
    agg1 = jnp.dot(adj, x.astype(jnp.bfloat16),
                   preferred_element_type=jnp.float32)                     # [N, F_in]
    z1 = (jnp.dot(agg1, wl1_ref[...], preferred_element_type=jnp.float32)
          + jnp.dot(x, wr1_ref[...], preferred_element_type=jnp.float32)
          + b1_ref[...])                                                   # [N, H]
    # TODO(synk): dropout is training-mode only; kernel implements eval (identity).
    h = jnp.maximum(z1, 0.0)                 # ReLU (f32)

    # ---------------- layer 2: SAGEConv(hidden -> out_pad) --------------------
    agg2 = jnp.dot(adj, h.astype(jnp.bfloat16),
                   preferred_element_type=jnp.float32)                     # [N, H]
    z2 = (jnp.dot(agg2, wl2_ref[...], preferred_element_type=jnp.float32)
          + jnp.dot(h, wr2_ref[...], preferred_element_type=jnp.float32)
          + b2_ref[...])                                                   # [N, F_pad]
    out = jnp.nan_to_num(z2, nan=0.0, posinf=10000.0, neginf=-10000.0)

    out_ref[...] = out.astype(out_ref.dtype)


def graphsage_forward_pallas(adj_bf16, x, prepared):
    """Single fused pallas_call covering both SAGEConv layers."""
    n, f_in = x.shape
    hidden = prepared["w_l1"].shape[1]
    f_out_pad = prepared["w_l2_pad"].shape[1]     # lane-dense (128-multiple) width

    # Advisory cost estimate for the XLA scheduler around the custom call.
    flops = 2 * n * (n * f_in + 2 * f_in * hidden + n * hidden + 2 * hidden * f_out_pad)
    bytes_accessed = (n * n * 2                      # adjacency (bf16)
                      + n * f_in * 4                 # x
                      + 2 * f_in * hidden * 4 + hidden * 4          # layer-1 params
                      + 2 * hidden * f_out_pad * 4 + f_out_pad * 4  # layer-2 params
                      + n * f_out_pad * 4)           # output
    cost = pl.CostEstimate(flops=flops, transcendentals=0,
                           bytes_accessed=bytes_accessed)

    out_padded = pl.pallas_call(
        graphsage_fused_kernel,
        out_shape=jax.ShapeDtypeStruct((n, f_out_pad), jnp.float32),
        in_specs=[
            pl.BlockSpec((n, n), lambda: (0, 0)),                 # adjacency (bf16)
            pl.BlockSpec((n, f_in), lambda: (0, 0)),              # x
            pl.BlockSpec((f_in, hidden), lambda: (0, 0)),         # W_l1
            pl.BlockSpec((f_in, hidden), lambda: (0, 0)),         # W_r1
            pl.BlockSpec((1, hidden), lambda: (0, 0)),            # b1
            pl.BlockSpec((hidden, f_out_pad), lambda: (0, 0)),    # W_l2 (padded)
            pl.BlockSpec((hidden, f_out_pad), lambda: (0, 0)),    # W_r2 (padded)
            pl.BlockSpec((1, f_out_pad), lambda: (0, 0)),         # b2 (padded)
        ],
        out_specs=pl.BlockSpec((n, f_out_pad), lambda: (0, 0)),
        cost_estimate=cost,
    )(adj_bf16, x, prepared["w_l1"], prepared["w_r1"], prepared["b1"],
      prepared["w_l2_pad"], prepared["w_r2_pad"], prepared["b2_pad"])

    return out_padded


# ----------------------------------------------------------------------------
# Glue: adjacency build (plain JAX, under jit) + one-time weight prep.
# ----------------------------------------------------------------------------
def build_mean_adjacency(edge_index, num_nodes):
    """A_norm[i, j] = (#edges j->i) / (#edges into i); rows with no edges stay 0
    (matches PyG scatter-mean, which fills isolated targets with 0)."""
    src = edge_index[0]
    dst = edge_index[1]
    counts = jnp.zeros((num_nodes, num_nodes), jnp.float32).at[dst, src].add(1.0)
    deg = counts.sum(axis=1, keepdims=True)
    return counts / jnp.maximum(deg, 1.0)


def prepare_params(params, out_channels):
    """One-time weight preparation, hoisted out of the per-call forward path:
    2-D biases and zero-padded layer-2 weights/bias up to a lane-dense
    (128-multiple) output width so the kernel's store is a full unmasked vst."""
    hidden = params["w_l1"].shape[1]
    f_out = out_channels
    f_out_pad = max(128, ((f_out + 127) // 128) * 128)
    return {
        "w_l1": params["w_l1"],
        "w_r1": params["w_r1"],
        "b1": params["b1"].reshape(1, hidden),
        "w_l2_pad": jnp.pad(params["w_l2"], ((0, 0), (0, f_out_pad - f_out))),
        "w_r2_pad": jnp.pad(params["w_r2"], ((0, 0), (0, f_out_pad - f_out))),
        "b2_pad": jnp.pad(params["b2"], (0, f_out_pad - f_out)).reshape(1, f_out_pad),
    }


@functools.partial(jax.jit, static_argnums=(3,))
def graphsage_forward(x, edge_index, prepared, out_channels):
    n = x.shape[0]
    adj_bf16 = build_mean_adjacency(edge_index, n).astype(jnp.bfloat16)
    out_padded = graphsage_forward_pallas(adj_bf16, x, prepared)
    return out_padded[:, :out_channels]


def init_params(key, in_channels, hidden_channels, out_channels):
    k1, k2, k3, k4 = jax.random.split(key, 4)
    scale1 = 1.0 / jnp.sqrt(in_channels)
    scale2 = 1.0 / jnp.sqrt(hidden_channels)
    return {
        # layer 1: in -> hidden
        "w_l1": jax.random.normal(k1, (in_channels, hidden_channels), jnp.float32) * scale1,
        "w_r1": jax.random.normal(k2, (in_channels, hidden_channels), jnp.float32) * scale1,
        "b1": jnp.zeros((hidden_channels,), jnp.float32),
        # layer 2: hidden -> out
        "w_l2": jax.random.normal(k3, (hidden_channels, out_channels), jnp.float32) * scale2,
        "w_r2": jax.random.normal(k4, (hidden_channels, out_channels), jnp.float32) * scale2,
        "b2": jnp.zeros((out_channels,), jnp.float32),
    }


def graphsage_reference(x, edge_index, params):
    """Pure-JAX f32 reference (mirrors the PyTorch module in eval mode)."""
    n = x.shape[0]
    adj = build_mean_adjacency(edge_index, n)
    h = adj @ x @ params["w_l1"] + x @ params["w_r1"] + params["b1"]
    h = jnp.maximum(h, 0.0)
    out = adj @ h @ params["w_l2"] + h @ params["w_r2"] + params["b2"]
    return jnp.nan_to_num(out, nan=0.0, posinf=10000.0, neginf=-10000.0)


if __name__ == "__main__":
    key = jax.random.PRNGKey(0)

    num_nodes = 64
    in_channels, hidden_channels, out_channels = 16, 32, 8

    k_x, k_e, k_p = jax.random.split(key, 3)

    # Deterministic node features.
    x = jax.random.normal(k_x, (num_nodes, in_channels), jnp.float32)

    # Deterministic edge_index [2, E]: bidirectional ring + a few random edges.
    idx = jnp.arange(num_nodes)
    ring_src = jnp.concatenate([idx, (idx + 1) % num_nodes])
    ring_dst = jnp.concatenate([(idx + 1) % num_nodes, idx])
    rnd_src = jax.random.randint(k_e, (num_nodes,), 0, num_nodes)
    rnd_dst = (rnd_src + 7) % num_nodes
    edge_index = jnp.stack(
        [jnp.concatenate([ring_src, rnd_src]), jnp.concatenate([ring_dst, rnd_dst])]
    ).astype(jnp.int32)  # shape [2, 192]

    params = init_params(k_p, in_channels, hidden_channels, out_channels)
    prepared = prepare_params(params, out_channels)   # one-time weight prep

    out = graphsage_forward(x, edge_index, prepared, out_channels)
    jax.block_until_ready(out)

    assert out.shape == (num_nodes, out_channels)
    assert bool(jnp.all(jnp.isfinite(out)))

    # bf16 MXU operands in the aggregation matmuls -> slightly looser tolerance
    # vs. the f32 reference.
    ref = graphsage_reference(x, edge_index, params)
    assert bool(jnp.allclose(out, ref, rtol=5e-2, atol=1e-1))

    print("KERNEL_OK")
</pallas_src>

<mosaic_0001>
module attributes {stable_mosaic.version = 11 : i64} {
  func.func private @main(%arg0: i32) attributes {dimension_semantics = [#tpu.dimension_semantics<core_parallel>], iteration_bounds = array<i64: 2>, tpu.core_type = #tpu.core_type<sc_scalar_subcore>, window_params = []} {
    return
  }
}

module attributes {stable_mosaic.version = 11 : i64} {
  func.func private @main(%arg0: i32) attributes {dimension_semantics = [#tpu.dimension_semantics<core_parallel>], iteration_bounds = array<i64: 2>, tpu.core_type = #tpu.core_type<sc_scalar_subcore>, window_params = []} {
    return
  }
}

module attributes {stable_mosaic.version = 11 : i64} {
  func.func @graphsage_fused_kernel(%arg0: memref<64x64xbf16, #tpu.memory_space<vmem>>, %arg1: memref<64x16xf32, #tpu.memory_space<vmem>>, %arg2: memref<16x32xf32, #tpu.memory_space<vmem>>, %arg3: memref<16x32xf32, #tpu.memory_space<vmem>>, %arg4: memref<1x32xf32, #tpu.memory_space<vmem>>, %arg5: memref<32x128xf32, #tpu.memory_space<vmem>>, %arg6: memref<32x128xf32, #tpu.memory_space<vmem>>, %arg7: memref<1x128xf32, #tpu.memory_space<vmem>>, %arg8: memref<64x128xf32, #tpu.memory_space<vmem>>) attributes {dimension_semantics = [], scalar_prefetch = 0 : i64, scratch_operands = 0 : i64, tpu.core_type = #tpu.core_type<tc>} {
    %c0 = arith.constant 0 : index
    %c0_0 = arith.constant 0 : index
    %0 = vector.load %arg0[%c0, %c0_0] : memref<64x64xbf16, #tpu.memory_space<vmem>>, vector<64x64xbf16>
    %c0_1 = arith.constant 0 : index
    %c0_2 = arith.constant 0 : index
    %1 = vector.load %arg1[%c0_1, %c0_2] : memref<64x16xf32, #tpu.memory_space<vmem>>, vector<64x16xf32>
    %2 = arith.truncf %1 : vector<64x16xf32> to vector<64x16xbf16>
    %cst = arith.constant dense<0.000000e+00> : vector<64x16xf32>
    %3 = tpu.matmul %0, %2, %cst {dimension_numbers = #tpu.dot_dimension_numbers<[1], [0], [0], [1], [0, 0, 1, 1], [], []>} : vector<64x64xbf16>, vector<64x16xbf16>, vector<64x16xf32> -> vector<64x16xf32>
    %c0_3 = arith.constant 0 : index
    %c0_4 = arith.constant 0 : index
    %4 = vector.load %arg2[%c0_3, %c0_4] : memref<16x32xf32, #tpu.memory_space<vmem>>, vector<16x32xf32>
    %cst_5 = arith.constant dense<0.000000e+00> : vector<64x32xf32>
    %5 = tpu.matmul %3, %4, %cst_5 {dimension_numbers = #tpu.dot_dimension_numbers<[1], [0], [0], [1], [0, 0, 1, 1], [], []>} : vector<64x16xf32>, vector<16x32xf32>, vector<64x32xf32> -> vector<64x32xf32>
    %c0_6 = arith.constant 0 : index
    %c0_7 = arith.constant 0 : index
    %6 = vector.load %arg3[%c0_6, %c0_7] : memref<16x32xf32, #tpu.memory_space<vmem>>, vector<16x32xf32>
    %cst_8 = arith.constant dense<0.000000e+00> : vector<64x32xf32>
    %7 = tpu.matmul %1, %6, %cst_8 {dimension_numbers = #tpu.dot_dimension_numbers<[1], [0], [0], [1], [0, 0, 1, 1], [], []>} : vector<64x16xf32>, vector<16x32xf32>, vector<64x32xf32> -> vector<64x32xf32>
    %8 = arith.addf %5, %7 : vector<64x32xf32>
    %c0_9 = arith.constant 0 : index
    %c0_10 = arith.constant 0 : index
    %9 = vector.load %arg4[%c0_9, %c0_10] : memref<1x32xf32, #tpu.memory_space<vmem>>, vector<1x32xf32>
    %10 = vector.broadcast %9 : vector<1x32xf32> to vector<64x32xf32>
    %11 = arith.addf %8, %10 : vector<64x32xf32>
    %cst_11 = arith.constant 0.000000e+00 : f32
    %12 = vector.broadcast %cst_11 : f32 to vector<64x32xf32>
    %13 = arith.maximumf %11, %12 : vector<64x32xf32>
    %14 = arith.truncf %13 : vector<64x32xf32> to vector<64x32xbf16>
    %cst_12 = arith.constant dense<0.000000e+00> : vector<64x32xf32>
    %15 = tpu.matmul %0, %14, %cst_12 {dimension_numbers = #tpu.dot_dimension_numbers<[1], [0], [0], [1], [0, 0, 1, 1], [], []>} : vector<64x64xbf16>, vector<64x32xbf16>, vector<64x32xf32> -> vector<64x32xf32>
    %c0_13 = arith.constant 0 : index
    %c0_14 = arith.constant 0 : index
    %16 = vector.load %arg5[%c0_13, %c0_14] : memref<32x128xf32, #tpu.memory_space<vmem>>, vector<32x128xf32>
    %cst_15 = arith.constant dense<0.000000e+00> : vector<64x128xf32>
    %17 = tpu.matmul %15, %16, %cst_15 {dimension_numbers = #tpu.dot_dimension_numbers<[1], [0], [0], [1], [0, 0, 1, 1], [], []>} : vector<64x32xf32>, vector<32x128xf32>, vector<64x128xf32> -> vector<64x128xf32>
    %c0_16 = arith.constant 0 : index
    %c0_17 = arith.constant 0 : index
    %18 = vector.load %arg6[%c0_16, %c0_17] : memref<32x128xf32, #tpu.memory_space<vmem>>, vector<32x128xf32>
    %cst_18 = arith.constant dense<0.000000e+00> : vector<64x128xf32>
    %19 = tpu.matmul %13, %18, %cst_18 {dimension_numbers = #tpu.dot_dimension_numbers<[1], [0], [0], [1], [0, 0, 1, 1], [], []>} : vector<64x32xf32>, vector<32x128xf32>, vector<64x128xf32> -> vector<64x128xf32>
    %20 = arith.addf %17, %19 : vector<64x128xf32>
    %c0_19 = arith.constant 0 : index
    %c0_20 = arith.constant 0 : index
    %21 = vector.load %arg7[%c0_19, %c0_20] : memref<1x128xf32, #tpu.memory_space<vmem>>, vector<1x128xf32>
    %22 = vector.broadcast %21 : vector<1x128xf32> to vector<64x128xf32>
    %23 = arith.addf %20, %22 : vector<64x128xf32>
    %cst_21 = arith.constant 0.000000e+00 : f32
    %cst_22 = arith.constant -1.000000e+04 : f32
    %cst_23 = arith.constant 1.000000e+04 : f32
    %24 = arith.cmpf one, %23, %23 : vector<64x128xf32>
    %25 = vector.broadcast %cst_21 : f32 to vector<64x128xf32>
    %26 = arith.select %24, %25, %23 : vector<64x128xi1>, vector<64x128xf32>
    %cst_24 = arith.constant 0x7F800000 : f32
    %27 = vector.broadcast %cst_24 : f32 to vector<64x128xf32>
    %28 = arith.cmpf oeq, %26, %27 : vector<64x128xf32>
    %29 = vector.broadcast %cst_23 : f32 to vector<64x128xf32>
    %30 = arith.select %28, %29, %26 : vector<64x128xi1>, vector<64x128xf32>
    %cst_25 = arith.constant 0xFF800000 : f32
    %31 = vector.broadcast %cst_25 : f32 to vector<64x128xf32>
    %32 = arith.cmpf oeq, %30, %31 : vector<64x128xf32>
    %33 = vector.broadcast %cst_22 : f32 to vector<64x128xf32>
    %34 = arith.select %32, %33, %30 : vector<64x128xi1>, vector<64x128xf32>
    %c0_26 = arith.constant 0 : index
    %c0_27 = arith.constant 0 : index
    %35 = vector.load %arg8[%c0_26, %c0_27] : memref<64x128xf32, #tpu.memory_space<vmem>>, vector<64x128xf32>
    tpu.vector_store %arg8[%c0_26, %c0_27], %34 {strides = array<i32>} : memref<64x128xf32, #tpu.memory_space<vmem>>, vector<64x128xf32>,
    return
  }
}

</mosaic_0001>

<llo_original>
// kernel: graphsage_forward.1
$region0: #{graphsage_forward.1}
  #allocation0 [shape = 'u32[]', space=smem, size = 0x4, offset = 0x4, fixed_abs, tag = 'smem constant byte address 0x4 - core index']
  #allocation1 [shape = 'u32[144,128]{1,0:T(1,128)}', space=vmem, size = 0x12000, scoped, tag = 'internal scratch']
  %s0 = inlined_call_operand.vmem [shape: bf16[64,64], index: 0, kind: input, shape index: {}]
  %s1 = inlined_call_operand.vmem [shape: f32[64,16], index: 1, kind: input, shape index: {}]
  %s2 = inlined_call_operand.vmem [shape: f32[16,32], index: 2, kind: input, shape index: {}]
  %s3 = inlined_call_operand.vmem [shape: f32[16,32], index: 3, kind: input, shape index: {}]
  %s4 = inlined_call_operand.vmem [shape: f32[1,32], index: 4, kind: input, shape index: {}]
  %s5 = inlined_call_operand.vmem [shape: f32[32,128], index: 5, kind: input, shape index: {}]
  %s6 = inlined_call_operand.vmem [shape: f32[32,128], index: 6, kind: input, shape index: {}]
  %s7 = inlined_call_operand.vmem [shape: f32[1,128], index: 7, kind: input, shape index: {}]
  %s8 = inlined_call_operand.vmem [shape: f32[64,128], index: 8, kind: output, shape index: {}]
  %s9 = sld [smem:[#allocation0]]
  $region42: #{graphsage_forward.1} parent=0
    _
  %s11 = ssub.s32 1, %s9
  %s12 = scalar_select 0, %s11, %s9
  // Predicated region
  $region2: #{graphsage_forward.1} parent=0 // pred_check
    _
  $region3: #{graphsage_forward.1} parent=0 // pred_check_branch
    %14 = sbr.rel (0) target = $region5
  $region4: #{graphsage_forward.1} parent=0 // pred_region
    _
  $region5: #{graphsage_forward.1} parent=0 // pred_fallthru
    _
  // Predicated region
  $region6: #{graphsage_forward.1} parent=0 // pred_check
    _
  $region7: #{graphsage_forward.1} parent=0 // pred_check_branch
    %16 = sbr.rel (0) target = $region9
  $region8: #{graphsage_forward.1} parent=0 // pred_region
    _
  $region9: #{graphsage_forward.1} parent=0 // pred_fallthru
    _
  // Predicated region
  $region10: #{graphsage_forward.1} parent=0 // pred_check
    _
  $region11: #{graphsage_forward.1} parent=0 // pred_check_branch
    %18 = sbr.rel (0) target = $region13
  $region12: #{graphsage_forward.1} parent=0 // pred_region
    _
  $region13: #{graphsage_forward.1} parent=0 // pred_fallthru
    _
  // Predicated region
  $region14: #{graphsage_forward.1} parent=0 // pred_check
    _
  $region15: #{graphsage_forward.1} parent=0 // pred_check_branch
    %20 = sbr.rel (0) target = $region17
  $region16: #{graphsage_forward.1} parent=0 // pred_region
    _
  $region17: #{graphsage_forward.1} parent=0 // pred_fallthru
    _
  // Predicated region
  $region18: #{graphsage_forward.1} parent=0 // pred_check
    _
  $region19: #{graphsage_forward.1} parent=0 // pred_check_branch
    %22 = sbr.rel (0) target = $region21
  $region20: #{graphsage_forward.1} parent=0 // pred_region
    _
  $region21: #{graphsage_forward.1} parent=0 // pred_fallthru
    _
  // Predicated region
  $region22: #{graphsage_forward.1} parent=0 // pred_check
    _
  $region23: #{graphsage_forward.1} parent=0 // pred_check_branch
    %24 = sbr.rel (0) target = $region25
  $region24: #{graphsage_forward.1} parent=0 // pred_region
    _
  $region25: #{graphsage_forward.1} parent=0 // pred_fallthru
    _
  // Predicated region
  $region26: #{graphsage_forward.1} parent=0 // pred_check
    _
  $region27: #{graphsage_forward.1} parent=0 // pred_check_branch
    %26 = sbr.rel (0) target = $region29
  $region28: #{graphsage_forward.1} parent=0 // pred_region
    _
  $region29: #{graphsage_forward.1} parent=0 // pred_fallthru
    _
  // Predicated region
  $region30: #{graphsage_forward.1} parent=0 // pred_check
    _
  $region31: #{graphsage_forward.1} parent=0 // pred_check_branch
    %28 = sbr.rel (0) target = $region33
  $region32: #{graphsage_forward.1} parent=0 // pred_region
    _
  $region33: #{graphsage_forward.1} parent=0 // pred_fallthru
    _
  %v30 = vld [vmem:[%s0] sm:$0xf]
  %v31 = vld [vmem:[%s0 + $0x4] sm:$0xf]
  %v32 = vld [vmem:[%s0 + $0x8] sm:$0xf]
  %v33 = vld [vmem:[%s0 + $0xc] sm:$0xf]
  %v34 = vld [vmem:[%s0 + $0x10] sm:$0xf]
  %v35 = vld [vmem:[%s0 + $0x14] sm:$0xf]
  %v36 = vld [vmem:[%s0 + $0x18] sm:$0xf]
  %v37 = vld [vmem:[%s0 + $0x1c] sm:$0xf]
  %v38 = vld [vmem:[%s1] sm:$0xff]
  %v39 = vld [vmem:[%s1 + $0x8] sm:$0xff]
  %v40 = vld [vmem:[%s1 + $0x10] sm:$0xff]
  %v41 = vld [vmem:[%s1 + $0x18] sm:$0xff]
  %v42 = vld [vmem:[%s1 + $0x20] sm:$0xff]
  %v43 = vld [vmem:[%s1 + $0x28] sm:$0xff]
  %v44 = vld [vmem:[%s1 + $0x30] sm:$0xff]
  %v45 = vld [vmem:[%s1 + $0x38] sm:$0xff]
  %v46 = vpack.c.bf16 %v39, %v38
  %v47 = vpack.c.bf16 %v41, %v40
  %v48 = vpack.c.bf16 %v43, %v42
  %v49 = vpack.c.bf16 %v45, %v44
  %v58 = vunpack.c.l.b16 %v30
  %v59 = vunpack.c.l.b16 %v31
  %v60 = vunpack.c.l.b16 %v32
  %v61 = vunpack.c.l.b16 %v33
  %v62 = vunpack.c.l.b16 %v34
  %v63 = vunpack.c.l.b16 %v35
  %v64 = vunpack.c.l.b16 %v36
  %v65 = vunpack.c.l.b16 %v37
  %v66 = vpack.c.b16 %v59, %v58
  %v67 = vpack.c.b16 %v61, %v60
  %v68 = vpack.c.b16 %v63, %v62
  %v69 = vpack.c.b16 %v65, %v64
  %vm70 = vcmask 523264
  %v72 = vsel %vm70, %v66, 0
  %v75 = vsel %vm70, %v67, 0
  %v78 = vsel %vm70, %v68, 0
  %v81 = vsel %vm70, %v69, 0
  %83 = vmatprep.subr.bf16.mxu0 0
  %84 = vmatpush1.bf16.msra.mxu0 %v46
  %85 = vmatprep.subr.bf16.mxu0 0
  %86 = vmatpush1.bf16.msra.mxu0 %v47
  %87 = vmatprep.subr.bf16.mxu0 0
  %88 = vmatpush1.bf16.msra.mxu0 %v48
  %89 = vmatprep.subr.bf16.mxu0 0
  %90 = vmatpush1.bf16.msra.mxu0 %v49
  %91 = vmatprep.subr.bf16.mxu0 0
  %92 = vmatpush1.bf16.msra.mxu0 0
  %93 = vmatprep.subr.bf16.mxu0 0
  %94 = vmatpush1.bf16.msra.mxu0 0
  %95 = vmatprep.subr.bf16.mxu0 0
  %96 = vmatpush1.bf16.msra.mxu0 0
  %97 = vmatprep.subr.bf16.mxu0 0
  %98 = vmatpush1.bf16.msra.mxu0 0
  %99 = vmatprep.subr.bf16.mxu0 0
  %100 = vmatpush1.bf16.msra.mxu0 0
  %101 = vmatprep.subr.bf16.mxu0 0
  %102 = vmatpush1.bf16.msra.mxu0 0
  %103 = vmatprep.subr.bf16.mxu0 0
  %104 = vmatpush1.bf16.msra.mxu0 0
  %105 = vmatprep.subr.bf16.mxu0 0
  %106 = vmatpush1.bf16.msra.mxu0 0
  %107 = vmatprep.subr.bf16.mxu0 0
  %108 = vmatpush1.bf16.msra.mxu0 0
  %109 = vmatprep.subr.bf16.mxu0 0
  %110 = vmatpush1.bf16.msra.mxu0 0
  %111 = vmatprep.subr.bf16.mxu0 0
  %112 = vmatpush1.bf16.msra.mxu0 0
  %113 = vmatprep.subr.bf16.mxu0 0
  %114 = vmatpush1.bf16.msra.mxu0 0
  %115 = vmatprep.mubr.bf16.mxu0 0
  %116 = vmatmul.mubr.bf16.gmra.mrb[0].mxu0 %v72
  %v117 = vpop.f32.mrb[0].mxu0
  %v118 = vadd.f32 0.0, %v117
  %v119 = vpop.f32.mrb[0].mxu0
  %v120 = vpop.f32.mrb[0].mxu0
  %v121 = vadd.f32 0.0, %v120
  %v122 = vpop.f32.mrb[0].mxu0
  %123 = vmatprep.mubr.bf16.mxu0 0
  %124 = vmatmul.mubr.bf16.gmra.mrb[0].mxu0 %v75
  %v125 = vpop.f32.mrb[0].mxu0
  %v126 = vadd.f32 0.0, %v125
  %v127 = vpop.f32.mrb[0].mxu0
  %v128 = vpop.f32.mrb[0].mxu0
  %v129 = vadd.f32 0.0, %v128
  %v130 = vpop.f32.mrb[0].mxu0
  %131 = vmatprep.mubr.bf16.mxu0 0
  %132 = vmatmul.mubr.bf16.gmra.mrb[0].mxu0 %v78
  %v133 = vpop.f32.mrb[0].mxu0
  %v134 = vadd.f32 0.0, %v133
  %v135 = vpop.f32.mrb[0].mxu0
  %v136 = vpop.f32.mrb[0].mxu0
  %v137 = vadd.f32 0.0, %v136
  %v138 = vpop.f32.mrb[0].mxu0
  %139 = vmatprep.mubr.bf16.mxu0 0
  %140 = vmatmul.mubr.bf16.gmra.mrb[0].mxu0 %v81
  %v141 = vpop.f32.mrb[0].mxu0
  %v142 = vadd.f32 0.0, %v141
  %v143 = vpop.f32.mrb[0].mxu0
  %v144 = vpop.f32.mrb[0].mxu0
  %v145 = vadd.f32 0.0, %v144
  %v146 = vpop.f32.mrb[0].mxu0
  %147 = vdwg.mxu0
  %v148 = vld [vmem:[%s2] sm:$0xff]
  %v149 = vld [vmem:[%s2 + $0x8] sm:$0xff]
  %v150 = vld [vmem:[%s3] sm:$0xff]
  %v151 = vld [vmem:[%s3 + $0x8] sm:$0xff]
  %vm152 = vcmask 130048
  %v154 = vsel %vm152, %v38, 0
  %v157 = vsel %vm152, %v39, 0
  %v160 = vsel %vm152, %v40, 0
  %v163 = vsel %vm152, %v41, 0
  %v166 = vsel %vm152, %v42, 0
  %v169 = vsel %vm152, %v43, 0
  %v172 = vsel %vm152, %v44, 0
  %v175 = vsel %vm152, %v45, 0
  %177 = vmatprep.subr.mxu0 0.0
  %178 = vmatpush1.msra.mxu0 %v150
  %179 = vmatprep.subr.mxu0 0.0
  %180 = vmatpush1.msra.mxu0 %v151
  %181 = vmatprep.subr.mxu0 0.0
  %182 = vmatpush1.msra.mxu0 0.0
  %183 = vmatprep.subr.mxu0 0.0
  %184 = vmatpush1.msra.mxu0 0.0
  %185 = vmatprep.subr.mxu0 0.0
  %186 = vmatpush1.msra.mxu0 0.0
  %187 = vmatprep.subr.mxu0 0.0
  %188 = vmatpush1.msra.mxu0 0.0
  %189 = vmatprep.subr.mxu0 0.0
  %190 = vmatpush1.msra.mxu0 0.0
  %191 = vmatprep.subr.mxu0 0.0
  %192 = vmatpush1.msra.mxu0 0.0
  %193 = vmatprep.subr.mxu0 0.0
  %194 = vmatpush1.msra.mxu0 0.0
  %195 = vmatprep.subr.mxu0 0.0
  %196 = vmatpush1.msra.mxu0 0.0
  %197 = vmatprep.subr.mxu0 0.0
  %198 = vmatpush1.msra.mxu0 0.0
  %199 = vmatprep.subr.mxu0 0.0
  %200 = vmatpush1.msra.mxu0 0.0
  %201 = vmatprep.subr.mxu0 0.0
  %202 = vmatpush1.msra.mxu0 0.0
  %203 = vmatprep.subr.mxu0 0.0
  %204 = vmatpush1.msra.mxu0 0.0
  %205 = vmatprep.subr.mxu0 0.0
  %206 = vmatpush1.msra.mxu0 0.0
  %207 = vmatprep.subr.mxu0 0.0
  %208 = vmatpush1.msra.mxu0 0.0
  %209 = vmatprep.subr.mxu0 0.0
  %210 = vmatpush1.msra.mxu0 0.0
  %211 = vmatprep.subr.mxu0 0.0
  %212 = vmatpush1.msra.mxu0 0.0
  %213 = vmatprep.subr.mxu0 0.0
  %214 = vmatpush1.msra.mxu0 0.0
  %215 = vmatprep.subr.mxu0 0.0
  %216 = vmatpush1.msra.mxu0 0.0
  %217 = vmatprep.subr.mxu0 0.0
  %218 = vmatpush1.msra.mxu0 0.0
  %219 = vmatprep.subr.mxu0 0.0
  %220 = vmatpush1.msra.mxu0 0.0
  %221 = vmatprep.subr.mxu0 0.0
  %222 = vmatpush1.msra.mxu0 0.0
  %223 = vmatprep.subr.mxu0 0.0
  %224 = vmatpush1.msra.mxu0 0.0
  %225 = vmatprep.subr.mxu0 0.0
  %226 = vmatpush1.msra.mxu0 0.0
  %227 = vmatprep.subr.mxu0 0.0
  %228 = vmatpush1.msra.mxu0 0.0
  %229 = vmatprep.subr.mxu0 0.0
  %230 = vmatpush1.msra.mxu0 0.0
  %231 = vmatprep.subr.mxu0 0.0
  %232 = vmatpush1.msra.mxu0 0.0
  %233 = vmatprep.subr.mxu0 0.0
  %234 = vmatpush1.msra.mxu0 0.0
  %235 = vmatprep.subr.mxu0 0.0
  %236 = vmatpush1.msra.mxu0 0.0
  %237 = vmatprep.subr.mxu0 0.0
  %238 = vmatpush1.msra.mxu0 0.0
  %239 = vmatprep.subr.mxu0 0.0
  %240 = vmatpush1.msra.mxu0 0.0
  %241 = vmatprep.mubr.f32.mxu0 0.0
  %242 = vmatmul.mubr.f32.gmra.mrb[0].mxu0 %v154
  %v243 = vpop.f32.mrb[0].mxu0
  %v244 = vadd.f32 0.0, %v243
  %v245 = vpop.f32.mrb[0].mxu0
  %246 = vmatprep.mubr.f32.mxu0 0.0
  %247 = vmatmul.mubr.f32.gmra.mrb[0].mxu0 %v157
  %v248 = vpop.f32.mrb[0].mxu0
  %v249 = vadd.f32 0.0, %v248
  %v250 = vpop.f32.mrb[0].mxu0
  %251 = vmatprep.mubr.f32.mxu0 0.0
  %252 = vmatmul.mubr.f32.gmra.mrb[0].mxu0 %v160
  %v253 = vpop.f32.mrb[0].mxu0
  %v254 = vadd.f32 0.0, %v253
  %v255 = vpop.f32.mrb[0].mxu0
  %256 = vmatprep.mubr.f32.mxu0 0.0
  %257 = vmatmul.mubr.f32.gmra.mrb[0].mxu0 %v163
  %v258 = vpop.f32.mrb[0].mxu0
  %v259 = vadd.f32 0.0, %v258
  %v260 = vpop.f32.mrb[0].mxu0
  %261 = vmatprep.mubr.f32.mxu0 0.0
  %262 = vmatmul.mubr.f32.gmra.mrb[0].mxu0 %v166
  %v263 = vpop.f32.mrb[0].mxu0
  %v264 = vadd.f32 0.0, %v263
  %v265 = vpop.f32.mrb[0].mxu0
  %266 = vmatprep.mubr.f32.mxu0 0.0
  %267 = vmatmul.mubr.f32.gmra.mrb[0].mxu0 %v169
  %v268 = vpop.f32.mrb[0].mxu0
  %v269 = vadd.f32 0.0, %v268
  %v270 = vpop.f32.mrb[0].mxu0
  %271 = vmatprep.mubr.f32.mxu0 0.0
  %272 = vmatmul.mubr.f32.gmra.mrb[0].mxu0 %v172
  %v273 = vpop.f32.mrb[0].mxu0
  %v274 = vadd.f32 0.0, %v273
  %v275 = vpop.f32.mrb[0].mxu0
  %276 = vmatprep.mubr.f32.mxu0 0.0
  %277 = vmatmul.mubr.f32.gmra.mrb[0].mxu0 %v175
  %v278 = vpop.f32.mrb[0].mxu0
  %v279 = vadd.f32 0.0, %v278
  %v280 = vpop.f32.mrb[0].mxu0
  %281 = vdwg.mxu0
  %v283 = vsel %vm152, %v118, 0
  %v286 = vsel %vm152, %v121, 0
  %v289 = vsel %vm152, %v126, 0
  %v292 = vsel %vm152, %v129, 0
  %v295 = vsel %vm152, %v134, 0
  %v298 = vsel %vm152, %v137, 0
  %v301 = vsel %vm152, %v142, 0
  %v304 = vsel %vm152, %v145, 0
  %306 = vmatprep.subr.mxu0 0.0
  %307 = vmatpush1.msra.mxu0 %v148
  %308 = vmatprep.subr.mxu0 0.0
  %309 = vmatpush1.msra.mxu0 %v149
  %310 = vmatprep.subr.mxu0 0.0
  %311 = vmatpush1.msra.mxu0 0.0
  %312 = vmatprep.subr.mxu0 0.0
  %313 = vmatpush1.msra.mxu0 0.0
  %314 = vmatprep.subr.mxu0 0.0
  %315 = vmatpush1.msra.mxu0 0.0
  %316 = vmatprep.subr.mxu0 0.0
  %317 = vmatpush1.msra.mxu0 0.0
  %318 = vmatprep.subr.mxu0 0.0
  %319 = vmatpush1.msra.mxu0 0.0
  %320 = vmatprep.subr.mxu0 0.0
  %321 = vmatpush1.msra.mxu0 0.0
  %322 = vmatprep.subr.mxu0 0.0
  %323 = vmatpush1.msra.mxu0 0.0
  %324 = vmatprep.subr.mxu0 0.0
  %325 = vmatpush1.msra.mxu0 0.0
  %326 = vmatprep.subr.mxu0 0.0
  %327 = vmatpush1.msra.mxu0 0.0
  %328 = vmatprep.subr.mxu0 0.0
  %329 = vmatpush1.msra.mxu0 0.0
  %330 = vmatprep.subr.mxu0 0.0
  %331 = vmatpush1.msra.mxu0 0.0
  %332 = vmatprep.subr.mxu0 0.0
  %333 = vmatpush1.msra.mxu0 0.0
  %334 = vmatprep.subr.mxu0 0.0
  %335 = vmatpush1.msra.mxu0 0.0
  %336 = vmatprep.subr.mxu0 0.0
  %337 = vmatpush1.msra.mxu0 0.0
  %338 = vmatprep.subr.mxu0 0.0
  %339 = vmatpush1.msra.mxu0 0.0
  %340 = vmatprep.subr.mxu0 0.0
  %341 = vmatpush1.msra.mxu0 0.0
  %342 = vmatprep.subr.mxu0 0.0
  %343 = vmatpush1.msra.mxu0 0.0
  %344 = vmatprep.subr.mxu0 0.0
  %345 = vmatpush1.msra.mxu0 0.0
  %346 = vmatprep.subr.mxu0 0.0
  %347 = vmatpush1.msra.mxu0 0.0
  %348 = vmatprep.subr.mxu0 0.0
  %349 = vmatpush1.msra.mxu0 0.0
  %350 = vmatprep.subr.mxu0 0.0
  %351 = vmatpush1.msra.mxu0 0.0
  %352 = vmatprep.subr.mxu0 0.0
  %353 = vmatpush1.msra.mxu0 0.0
  %354 = vmatprep.subr.mxu0 0.0
  %355 = vmatpush1.msra.mxu0 0.0
  %356 = vmatprep.subr.mxu0 0.0
  %357 = vmatpush1.msra.mxu0 0.0
  %358 = vmatprep.subr.mxu0 0.0
  %359 = vmatpush1.msra.mxu0 0.0
  %360 = vmatprep.subr.mxu0 0.0
  %361 = vmatpush1.msra.mxu0 0.0
  %362 = vmatprep.subr.mxu0 0.0
  %363 = vmatpush1.msra.mxu0 0.0
  %364 = vmatprep.subr.mxu0 0.0
  %365 = vmatpush1.msra.mxu0 0.0
  %366 = vmatprep.subr.mxu0 0.0
  %367 = vmatpush1.msra.mxu0 0.0
  %368 = vmatprep.subr.mxu0 0.0
  %369 = vmatpush1.msra.mxu0 0.0
  %370 = vmatprep.mubr.f32.mxu0 0.0
  %371 = vmatmul.mubr.f32.gmra.mrb[0].mxu0 %v283
  %v372 = vpop.f32.mrb[0].mxu0
  %v373 = vadd.f32 %v244, %v372
  %v374 = vpop.f32.mrb[0].mxu0
  %375 = vmatprep.mubr.f32.mxu0 0.0
  %376 = vmatmul.mubr.f32.gmra.mrb[0].mxu0 %v286
  %v377 = vpop.f32.mrb[0].mxu0
  %v378 = vadd.f32 %v249, %v377
  %v379 = vpop.f32.mrb[0].mxu0
  %380 = vmatprep.mubr.f32.mxu0 0.0
  %381 = vmatmul.mubr.f32.gmra.mrb[0].mxu0 %v289
  %v382 = vpop.f32.mrb[0].mxu0
  %v383 = vadd.f32 %v254, %v382
  %v384 = vpop.f32.mrb[0].mxu0
  %385 = vmatprep.mubr.f32.mxu0 0.0
  %386 = vmatmul.mubr.f32.gmra.mrb[0].mxu0 %v292
  %v387 = vpop.f32.mrb[0].mxu0
  %v388 = vadd.f32 %v259, %v387
  %v389 = vpop.f32.mrb[0].mxu0
  %390 = vmatprep.mubr.f32.mxu0 0.0
  %391 = vmatmul.mubr.f32.gmra.mrb[0].mxu0 %v295
  %v392 = vpop.f32.mrb[0].mxu0
  %v393 = vadd.f32 %v264, %v392
  %v394 = vpop.f32.mrb[0].mxu0
  %395 = vmatprep.mubr.f32.mxu0 0.0
  %396 = vmatmul.mubr.f32.gmra.mrb[0].mxu0 %v298
  %v397 = vpop.f32.mrb[0].mxu0
  %v398 = vadd.f32 %v269, %v397
  %v399 = vpop.f32.mrb[0].mxu0
  %400 = vmatprep.mubr.f32.mxu0 0.0
  %401 = vmatmul.mubr.f32.gmra.mrb[0].mxu0 %v301
  %v402 = vpop.f32.mrb[0].mxu0
  %v403 = vadd.f32 %v274, %v402
  %v404 = vpop.f32.mrb[0].mxu0
  %405 = vmatprep.mubr.f32.mxu0 0.0
  %406 = vmatmul.mubr.f32.gmra.mrb[0].mxu0 %v304
  %v407 = vpop.f32.mrb[0].mxu0
  %v408 = vadd.f32 %v279, %v407
  %v409 = vpop.f32.mrb[0].mxu0
  %410 = vdwg.mxu0
  %v411 = vld [vmem:[%s4] sm:$0x1]
  %v413 = vlaneseq
  %v414 = vshrl.u32 %v413, 7
  %v415 = vsub.s32 0, %v414
  %v416 = vrot.slane %v411, %v415
  %v418 = vadd.f32 %v373, %v416
  %v419 = vadd.f32 %v378, %v416
  %v420 = vadd.f32 %v383, %v416
  %v421 = vadd.f32 %v388, %v416
  %v422 = vadd.f32 %v393, %v416
  %v423 = vadd.f32 %v398, %v416
  %v424 = vadd.f32 %v403, %v416
  %v425 = vadd.f32 %v408, %v416
  %v426 = vmax.f32 %v418, 0.0
  %v427 = vmax.f32 %v419, 0.0
  %v428 = vmax.f32 %v420, 0.0
  %v429 = vmax.f32 %v421, 0.0
  %v430 = vmax.f32 %v422, 0.0
  %v431 = vmax.f32 %v423, 0.0
  %v432 = vmax.f32 %v424, 0.0
  %v433 = vmax.f32 %v425, 0.0
  %v434 = vpack.c.bf16 %v427, %v426
  %v435 = vpack.c.bf16 %v429, %v428
  %v436 = vpack.c.bf16 %v431, %v430
  %v437 = vpack.c.bf16 %v433, %v432
  %438 = vmatprep.subr.bf16.mxu0 0
  %439 = vmatpush1.bf16.msra.mxu0 %v434
  %440 = vmatprep.subr.bf16.mxu0 0
  %441 = vmatpush1.bf16.msra.mxu0 %v435
  %442 = vmatprep.subr.bf16.mxu0 0
  %443 = vmatpush1.bf16.msra.mxu0 %v436
  %444 = vmatprep.subr.bf16.mxu0 0
  %445 = vmatpush1.bf16.msra.mxu0 %v437
  %446 = vmatprep.subr.bf16.mxu0 0
  %447 = vmatpush1.bf16.msra.mxu0 0
  %448 = vmatprep.subr.bf16.mxu0 0
  %449 = vmatpush1.bf16.msra.mxu0 0
  %450 = vmatprep.subr.bf16.mxu0 0
  %451 = vmatpush1.bf16.msra.mxu0 0
  %452 = vmatprep.subr.bf16.mxu0 0
  %453 = vmatpush1.bf16.msra.mxu0 0
  %454 = vmatprep.subr.bf16.mxu0 0
  %455 = vmatpush1.bf16.msra.mxu0 0
  %456 = vmatprep.subr.bf16.mxu0 0
  %457 = vmatpush1.bf16.msra.mxu0 0
  %458 = vmatprep.subr.bf16.mxu0 0
  %459 = vmatpush1.bf16.msra.mxu0 0
  %460 = vmatprep.subr.bf16.mxu0 0
  %461 = vmatpush1.bf16.msra.mxu0 0
  %462 = vmatprep.subr.bf16.mxu0 0
  %463 = vmatpush1.bf16.msra.mxu0 0
  %464 = vmatprep.subr.bf16.mxu0 0
  %465 = vmatpush1.bf16.msra.mxu0 0
  %466 = vmatprep.subr.bf16.mxu0 0
  %467 = vmatpush1.bf16.msra.mxu0 0
  %468 = vmatprep.subr.bf16.mxu0 0
  %469 = vmatpush1.bf16.msra.mxu0 0
  %470 = vmatprep.mubr.bf16.mxu0 0
  %471 = vmatmul.mubr.bf16.gmra.mrb[0].mxu0 %v72
  %v472 = vpop.f32.mrb[0].mxu0
  %v473 = vadd.f32 0.0, %v472
  %v474 = vpop.f32.mrb[0].mxu0
  %v475 = vpop.f32.mrb[0].mxu0
  %v476 = vadd.f32 0.0, %v475
  %v477 = vpop.f32.mrb[0].mxu0
  %478 = vmatprep.mubr.bf16.mxu0 0
  %479 = vmatmul.mubr.bf16.gmra.mrb[0].mxu0 %v75
  %v480 = vpop.f32.mrb[0].mxu0
  %v481 = vadd.f32 0.0, %v480
  %v482 = vpop.f32.mrb[0].mxu0
  %v483 = vpop.f32.mrb[0].mxu0
  %v484 = vadd.f32 0.0, %v483
  %v485 = vpop.f32.mrb[0].mxu0
  %486 = vmatprep.mubr.bf16.mxu0 0
  %487 = vmatmul.mubr.bf16.gmra.mrb[0].mxu0 %v78
  %v488 = vpop.f32.mrb[0].mxu0
  %v489 = vadd.f32 0.0, %v488
  %v490 = vpop.f32.mrb[0].mxu0
  %v491 = vpop.f32.mrb[0].mxu0
  %v492 = vadd.f32 0.0, %v491
  %v493 = vpop.f32.mrb[0].mxu0
  %494 = vmatprep.mubr.bf16.mxu0 0
  %495 = vmatmul.mubr.bf16.gmra.mrb[0].mxu0 %v81
  %v496 = vpop.f32.mrb[0].mxu0
  %v497 = vadd.f32 0.0, %v496
  %v498 = vpop.f32.mrb[0].mxu0
  %v499 = vpop.f32.mrb[0].mxu0
  %v500 = vadd.f32 0.0, %v499
  %v501 = vpop.f32.mrb[0].mxu0
  %502 = vdwg.mxu0
  %v503 = vld [vmem:[%s5] sm:$0xff]
  %v504 = vld [vmem:[%s5 + $0x8] sm:$0xff]
  %v505 = vld [vmem:[%s5 + $0x10] sm:$0xff]
  %v506 = vld [vmem:[%s5 + $0x18] sm:$0xff]
  %v507 = vld [vmem:[%s6] sm:$0xff]
  %v508 = vld [vmem:[%s6 + $0x8] sm:$0xff]
  %v509 = vld [vmem:[%s6 + $0x10] sm:$0xff]
  %v510 = vld [vmem:[%s6 + $0x18] sm:$0xff]
  %vm511 = vcmask 261120
  %v513 = vsel %vm511, %v426, 0
  %v516 = vsel %vm511, %v427, 0
  %v519 = vsel %vm511, %v428, 0
  %v522 = vsel %vm511, %v429, 0
  %v525 = vsel %vm511, %v430, 0
  %v528 = vsel %vm511, %v431, 0
  %v531 = vsel %vm511, %v432, 0
  %v534 = vsel %vm511, %v433, 0
  %536 = vmatprep.subr.mxu0 0.0
  %537 = vmatpush1.msra.mxu0 %v507
  %538 = vmatprep.subr.mxu0 0.0
  %539 = vmatpush1.msra.mxu0 %v508
  %540 = vmatprep.subr.mxu0 0.0
  %541 = vmatpush1.msra.mxu0 %v509
  %542 = vmatprep.subr.mxu0 0.0
  %543 = vmatpush1.msra.mxu0 %v510
  %544 = vmatprep.subr.mxu0 0.0
  %545 = vmatpush1.msra.mxu0 0.0
  %546 = vmatprep.subr.mxu0 0.0
  %547 = vmatpush1.msra.mxu0 0.0
  %548 = vmatprep.subr.mxu0 0.0
  %549 = vmatpush1.msra.mxu0 0.0
  %550 = vmatprep.subr.mxu0 0.0
  %551 = vmatpush1.msra.mxu0 0.0
  %552 = vmatprep.subr.mxu0 0.0
  %553 = vmatpush1.msra.mxu0 0.0
  %554 = vmatprep.subr.mxu0 0.0
  %555 = vmatpush1.msra.mxu0 0.0
  %556 = vmatprep.subr.mxu0 0.0
  %557 = vmatpush1.msra.mxu0 0.0
  %558 = vmatprep.subr.mxu0 0.0
  %559 = vmatpush1.msra.mxu0 0.0
  %560 = vmatprep.subr.mxu0 0.0
  %561 = vmatpush1.msra.mxu0 0.0
  %562 = vmatprep.subr.mxu0 0.0
  %563 = vmatpush1.msra.mxu0 0.0
  %564 = vmatprep.subr.mxu0 0.0
  %565 = vmatpush1.msra.mxu0 0.0
  %566 = vmatprep.subr.mxu0 0.0
  %567 = vmatpush1.msra.mxu0 0.0
  %568 = vmatprep.subr.mxu0 0.0
  %569 = vmatpush1.msra.mxu0 0.0
  %570 = vmatprep.subr.mxu0 0.0
  %571 = vmatpush1.msra.mxu0 0.0
  %572 = vmatprep.subr.mxu0 0.0
  %573 = vmatpush1.msra.mxu0 0.0
  %574 = vmatprep.subr.mxu0 0.0
  %575 = vmatpush1.msra.mxu0 0.0
  %576 = vmatprep.subr.mxu0 0.0
  %577 = vmatpush1.msra.mxu0 0.0
  %578 = vmatprep.subr.mxu0 0.0
  %579 = vmatpush1.msra.mxu0 0.0
  %580 = vmatprep.subr.mxu0 0.0
  %581 = vmatpush1.msra.mxu0 0.0
  %582 = vmatprep.subr.mxu0 0.0
  %583 = vmatpush1.msra.mxu0 0.0
  %584 = vmatprep.subr.mxu0 0.0
  %585 = vmatpush1.msra.mxu0 0.0
  %586 = vmatprep.subr.mxu0 0.0
  %587 = vmatpush1.msra.mxu0 0.0
  %588 = vmatprep.subr.mxu0 0.0
  %589 = vmatpush1.msra.mxu0 0.0
  %590 = vmatprep.subr.mxu0 0.0
  %591 = vmatpush1.msra.mxu0 0.0
  %592 = vmatprep.subr.mxu0 0.0
  %593 = vmatpush1.msra.mxu0 0.0
  %594 = vmatprep.subr.mxu0 0.0
  %595 = vmatpush1.msra.mxu0 0.0
  %596 = vmatprep.subr.mxu0 0.0
  %597 = vmatpush1.msra.mxu0 0.0
  %598 = vmatprep.subr.mxu0 0.0
  %599 = vmatpush1.msra.mxu0 0.0
  %600 = vmatprep.mubr.f32.mxu0 0.0
  %601 = vmatmul.mubr.f32.gmra.mrb[0].mxu0 %v513
  %v602 = vpop.f32.mrb[0].mxu0
  %v603 = vadd.f32 0.0, %v602
  %v604 = vpop.f32.mrb[0].mxu0
  %605 = vmatprep.mubr.f32.mxu0 0.0
  %606 = vmatmul.mubr.f32.gmra.mrb[0].mxu0 %v516
  %v607 = vpop.f32.mrb[0].mxu0
  %v608 = vadd.f32 0.0, %v607
  %v609 = vpop.f32.mrb[0].mxu0
  %610 = vmatprep.mubr.f32.mxu0 0.0
  %611 = vmatmul.mubr.f32.gmra.mrb[0].mxu0 %v519
  %v612 = vpop.f32.mrb[0].mxu0
  %v613 = vadd.f32 0.0, %v612
  %v614 = vpop.f32.mrb[0].mxu0
  %615 = vmatprep.mubr.f32.mxu0 0.0
  %616 = vmatmul.mubr.f32.gmra.mrb[0].mxu0 %v522
  %v617 = vpop.f32.mrb[0].mxu0
  %v618 = vadd.f32 0.0, %v617
  %v619 = vpop.f32.mrb[0].mxu0
  %620 = vmatprep.mubr.f32.mxu0 0.0
  %621 = vmatmul.mubr.f32.gmra.mrb[0].mxu0 %v525
  %v622 = vpop.f32.mrb[0].mxu0
  %v623 = vadd.f32 0.0, %v622
  %v624 = vpop.f32.mrb[0].mxu0
  %625 = vmatprep.mubr.f32.mxu0 0.0
  %626 = vmatmul.mubr.f32.gmra.mrb[0].mxu0 %v528
  %v627 = vpop.f32.mrb[0].mxu0
  %v628 = vadd.f32 0.0, %v627
  %v629 = vpop.f32.mrb[0].mxu0
  %630 = vmatprep.mubr.f32.mxu0 0.0
  %631 = vmatmul.mubr.f32.gmra.mrb[0].mxu0 %v531
  %v632 = vpop.f32.mrb[0].mxu0
  %v633 = vadd.f32 0.0, %v632
  %v634 = vpop.f32.mrb[0].mxu0
  %635 = vmatprep.mubr.f32.mxu0 0.0
  %636 = vmatmul.mubr.f32.gmra.mrb[0].mxu0 %v534
  %v637 = vpop.f32.mrb[0].mxu0
  %v638 = vadd.f32 0.0, %v637
  %v639 = vpop.f32.mrb[0].mxu0
  %640 = vdwg.mxu0
  %v642 = vsel %vm511, %v473, 0
  %v645 = vsel %vm511, %v476, 0
  %v648 = vsel %vm511, %v481, 0
  %v651 = vsel %vm511, %v484, 0
  %v654 = vsel %vm511, %v489, 0
  %v657 = vsel %vm511, %v492, 0
  %v660 = vsel %vm511, %v497, 0
  %v663 = vsel %vm511, %v500, 0
  %665 = vmatprep.subr.mxu0 0.0
  %666 = vmatpush1.msra.mxu0 %v503
  %667 = vmatprep.subr.mxu0 0.0
  %668 = vmatpush1.msra.mxu0 %v504
  %669 = vmatprep.subr.mxu0 0.0
  %670 = vmatpush1.msra.mxu0 %v505
  %671 = vmatprep.subr.mxu0 0.0
  %672 = vmatpush1.msra.mxu0 %v506
  %673 = vmatprep.subr.mxu0 0.0
  %674 = vmatpush1.msra.mxu0 0.0
  %675 = vmatprep.subr.mxu0 0.0
  %676 = vmatpush1.msra.mxu0 0.0
  %677 = vmatprep.subr.mxu0 0.0
  %678 = vmatpush1.msra.mxu0 0.0
  %679 = vmatprep.subr.mxu0 0.0
  %680 = vmatpush1.msra.mxu0 0.0
  %681 = vmatprep.subr.mxu0 0.0
  %682 = vmatpush1.msra.mxu0 0.0
  %683 = vmatprep.subr.mxu0 0.0
  %684 = vmatpush1.msra.mxu0 0.0
  %685 = vmatprep.subr.mxu0 0.0
  %686 = vmatpush1.msra.mxu0 0.0
  %687 = vmatprep.subr.mxu0 0.0
  %688 = vmatpush1.msra.mxu0 0.0
  %689 = vmatprep.subr.mxu0 0.0
  %690 = vmatpush1.msra.mxu0 0.0
  %691 = vmatprep.subr.mxu0 0.0
  %692 = vmatpush1.msra.mxu0 0.0
  %693 = vmatprep.subr.mxu0 0.0
  %694 = vmatpush1.msra.mxu0 0.0
  %695 = vmatprep.subr.mxu0 0.0
  %696 = vmatpush1.msra.mxu0 0.0
  %697 = vmatprep.subr.mxu0 0.0
  %698 = vmatpush1.msra.mxu0 0.0
  %699 = vmatprep.subr.mxu0 0.0
  %700 = vmatpush1.msra.mxu0 0.0
  %701 = vmatprep.subr.mxu0 0.0
  %702 = vmatpush1.msra.mxu0 0.0
  %703 = vmatprep.subr.mxu0 0.0
  %704 = vmatpush1.msra.mxu0 0.0
  %705 = vmatprep.subr.mxu0 0.0
  %706 = vmatpush1.msra.mxu0 0.0
  %707 = vmatprep.subr.mxu0 0.0
  %708 = vmatpush1.msra.mxu0 0.0
  %709 = vmatprep.subr.mxu0 0.0
  %710 = vmatpush1.msra.mxu0 0.0
  %711 = vmatprep.subr.mxu0 0.0
  %712 = vmatpush1.msra.mxu0 0.0
  %713 = vmatprep.subr.mxu0 0.0
  %714 = vmatpush1.msra.mxu0 0.0
  %715 = vmatprep.subr.mxu0 0.0
  %716 = vmatpush1.msra.mxu0 0.0
  %717 = vmatprep.subr.mxu0 0.0
  %718 = vmatpush1.msra.mxu0 0.0
  %719 = vmatprep.subr.mxu0 0.0
  %720 = vmatpush1.msra.mxu0 0.0
  %721 = vmatprep.subr.mxu0 0.0
  %722 = vmatpush1.msra.mxu0 0.0
  %723 = vmatprep.subr.mxu0 0.0
  %724 = vmatpush1.msra.mxu0 0.0
  %725 = vmatprep.subr.mxu0 0.0
  %726 = vmatpush1.msra.mxu0 0.0
  %727 = vmatprep.subr.mxu0 0.0
  %728 = vmatpush1.msra.mxu0 0.0
  %729 = vmatprep.mubr.f32.mxu0 0.0
  %730 = vmatmul.mubr.f32.gmra.mrb[0].mxu0 %v642
  %v731 = vpop.f32.mrb[0].mxu0
  %v732 = vadd.f32 %v603, %v731
  %v733 = vpop.f32.mrb[0].mxu0
  %734 = vmatprep.mubr.f32.mxu0 0.0
  %735 = vmatmul.mubr.f32.gmra.mrb[0].mxu0 %v645
  %v736 = vpop.f32.mrb[0].mxu0
  %v737 = vadd.f32 %v608, %v736
  %v738 = vpop.f32.mrb[0].mxu0
  %739 = vmatprep.mubr.f32.mxu0 0.0
  %740 = vmatmul.mubr.f32.gmra.mrb[0].mxu0 %v648
  %v741 = vpop.f32.mrb[0].mxu0
  %v742 = vadd.f32 %v613, %v741
  %v743 = vpop.f32.mrb[0].mxu0
  %744 = vmatprep.mubr.f32.mxu0 0.0
  %745 = vmatmul.mubr.f32.gmra.mrb[0].mxu0 %v651
  %v746 = vpop.f32.mrb[0].mxu0
  %v747 = vadd.f32 %v618, %v746
  %v748 = vpop.f32.mrb[0].mxu0
  %749 = vmatprep.mubr.f32.mxu0 0.0
  %750 = vmatmul.mubr.f32.gmra.mrb[0].mxu0 %v654
  %v751 = vpop.f32.mrb[0].mxu0
  %v752 = vadd.f32 %v623, %v751
  %v753 = vpop.f32.mrb[0].mxu0
  %754 = vmatprep.mubr.f32.mxu0 0.0
  %755 = vmatmul.mubr.f32.gmra.mrb[0].mxu0 %v657
  %v756 = vpop.f32.mrb[0].mxu0
  %v757 = vadd.f32 %v628, %v756
  %v758 = vpop.f32.mrb[0].mxu0
  %759 = vmatprep.mubr.f32.mxu0 0.0
  %760 = vmatmul.mubr.f32.gmra.mrb[0].mxu0 %v660
  %v761 = vpop.f32.mrb[0].mxu0
  %v762 = vadd.f32 %v633, %v761
  %v763 = vpop.f32.mrb[0].mxu0
  %764 = vmatprep.mubr.f32.mxu0 0.0
  %765 = vmatmul.mubr.f32.gmra.mrb[0].mxu0 %v663
  %v766 = vpop.f32.mrb[0].mxu0
  %v767 = vadd.f32 %v638, %v766
  %v768 = vpop.f32.mrb[0].mxu0
  %769 = vdwg.mxu0
  %v770 = vld [vmem:[%s7] sm:$0x1]
  %v772 = vlaneseq
  %v773 = vshrl.u32 %v772, 7
  %v774 = vsub.s32 0, %v773
  %v775 = vrot.slane %v770, %v774
  %v777 = vadd.f32 %v732, %v775
  %v778 = vadd.f32 %v737, %v775
  %v779 = vadd.f32 %v742, %v775
  %v780 = vadd.f32 %v747, %v775
  %v781 = vadd.f32 %v752, %v775
  %v782 = vadd.f32 %v757, %v775
  %v783 = vadd.f32 %v762, %v775
  %v784 = vadd.f32 %v767, %v775
  %vm785 = vcmp.ne.f32.partialorder %v777, %v777
  %vm786 = vcmp.ne.f32.partialorder %v778, %v778
  %vm787 = vcmp.ne.f32.partialorder %v779, %v779
  %vm788 = vcmp.ne.f32.partialorder %v780, %v780
  %vm789 = vcmp.ne.f32.partialorder %v781, %v781
  %vm790 = vcmp.ne.f32.partialorder %v782, %v782
  %vm791 = vcmp.ne.f32.partialorder %v783, %v783
  %vm792 = vcmp.ne.f32.partialorder %v784, %v784
  %v793 = vsel %vm785, 0.0, %v777
  %v794 = vsel %vm786, 0.0, %v778
  %v795 = vsel %vm787, 0.0, %v779
  %v796 = vsel %vm788, 0.0, %v780
  %v797 = vsel %vm789, 0.0, %v781
  %v798 = vsel %vm790, 0.0, %v782
  %v799 = vsel %vm791, 0.0, %v783
  %v800 = vsel %vm792, 0.0, %v784
  %vm801 = vcmp.eq.f32.partialorder %v793, inf
  %vm802 = vcmp.eq.f32.partialorder %v794, inf
  %vm803 = vcmp.eq.f32.partialorder %v795, inf
  %vm804 = vcmp.eq.f32.partialorder %v796, inf
  %vm805 = vcmp.eq.f32.partialorder %v797, inf
  %vm806 = vcmp.eq.f32.partialorder %v798, inf
  %vm807 = vcmp.eq.f32.partialorder %v799, inf
  %vm808 = vcmp.eq.f32.partialorder %v800, inf
  %v809 = vsel %vm801, 10000.0, %v793
  %v810 = vsel %vm802, 10000.0, %v794
  %v811 = vsel %vm803, 10000.0, %v795
  %v812 = vsel %vm804, 10000.0, %v796
  %v813 = vsel %vm805, 10000.0, %v797
  %v814 = vsel %vm806, 10000.0, %v798
  %v815 = vsel %vm807, 10000.0, %v799
  %v816 = vsel %vm808, 10000.0, %v800
  %vm817 = vcmp.eq.f32.partialorder %v809, -inf
  %vm818 = vcmp.eq.f32.partialorder %v810, -inf
  %vm819 = vcmp.eq.f32.partialorder %v811, -inf
  %vm820 = vcmp.eq.f32.partialorder %v812, -inf
  %vm821 = vcmp.eq.f32.partialorder %v813, -inf
  %vm822 = vcmp.eq.f32.partialorder %v814, -inf
  %vm823 = vcmp.eq.f32.partialorder %v815, -inf
  %vm824 = vcmp.eq.f32.partialorder %v816, -inf
  %v825 = vsel %vm817, -10000.0, %v809
  %v826 = vsel %vm818, -10000.0, %v810
  %v827 = vsel %vm819, -10000.0, %v811
  %v828 = vsel %vm820, -10000.0, %v812
  %v829 = vsel %vm821, -10000.0, %v813
  %v830 = vsel %vm822, -10000.0, %v814
  %v831 = vsel %vm823, -10000.0, %v815
  %v832 = vsel %vm824, -10000.0, %v816
  %833 = vst [vmem:[%s8] sm:$0xff] %v825
  %834 = vst [vmem:[%s8 + $0x8] sm:$0xff] %v826
  %835 = vst [vmem:[%s8 + $0x10] sm:$0xff] %v827
  %836 = vst [vmem:[%s8 + $0x18] sm:$0xff] %v828
  %837 = vst [vmem:[%s8 + $0x20] sm:$0xff] %v829
  %838 = vst [vmem:[%s8 + $0x28] sm:$0xff] %v830
  %839 = vst [vmem:[%s8 + $0x30] sm:$0xff] %v831
  %840 = vst [vmem:[%s8 + $0x38] sm:$0xff] %v832
  // Predicated region
  $region34: #{graphsage_forward.1} parent=0 // pred_check
    _
  $region35: #{graphsage_forward.1} parent=0 // pred_check_branch
    %842 = sbr.rel (0) target = $region37
  $region36: #{graphsage_forward.1} parent=0 // pred_region
    _
  $region37: #{graphsage_forward.1} parent=0 // pred_fallthru
    _
  // Predicated region
  $region38: #{graphsage_forward.1} parent=0 // pred_check
    _
  $region39: #{graphsage_forward.1} parent=0 // pred_check_branch
    %844 = sbr.rel (0) target = $region41
  $region40: #{graphsage_forward.1} parent=0 // pred_region
    _
  $region41: #{graphsage_forward.1} parent=0 // pred_fallthru
    _

</llo_original>
